<compile_context>
chip_gen: v5e
topology: v5e:2x2
jax: 0.10.0
libtpu: 0.0.40
codegen_flags: <defaults>
</compile_context>

<pallas_src>
import jax
import jax.numpy as jnp
from jax.experimental import pallas as pl
from jax.experimental.pallas import tpu as pltpu

# --- vocab setup, mirroring the PyTorch script -------------------------------
sentences = ['I am a student', 'He is a customer', 'She is a customer',
             'Mzzdx is author', 'Xjzs is mzzdx']
words = ' '.join(sentences).split()
word_list = list(sorted(set(words)))
VOCAB_SIZE = len(word_list)          # 12
EMBED_DIM = 16                       # small hidden size


# --- Pallas kernel ------------------------------------------------------------
def cbow_kernel(idx_ref, emb_t_ref, dec_t_ref, out_ref):
    # idx_ref:   SMEM [C]     int32 context word indices (replaces one-hot rows)
    # emb_t_ref: VMEM [V, E]  embedding table, row i = embedding of word i (W_emb^T)
    # dec_t_ref: VMEM [E, V]  decoder weight, pre-transposed (W_dec^T)
    # out_ref:   VMEM [1, V]
    num_context = idx_ref.shape[0]

    # Gather + accumulate the context embeddings (VPU adds, no MXU, no one-hot).
    acc = emb_t_ref[pl.ds(idx_ref[0], 1), :]                 # [1, E]
    for c in range(1, num_context):                          # static unroll (C tiny)
        acc = acc + emb_t_ref[pl.ds(idx_ref[c], 1), :]

    # Mean folded before the decoder matmul (mean and matmul commute).
    hidden = acc * (1.0 / num_context)                       # [1, E]

    # Decoder: [1,E] x [E,V] -> [1,V]; weights already laid out, no .T in-kernel.
    out = jnp.dot(hidden, dec_t_ref[...], preferred_element_type=jnp.float32)
    out_ref[...] = out.astype(out_ref.dtype)


def cbow_forward(context_idx, w_emb, w_dec):
    """CBOW forward from integer context indices.

    context_idx: [C] int32 word ids (equivalent to the rows of the one-hot input)
    w_emb:       [E, V]  embeddings.weight (PyTorch layout)
    w_dec:       [V, E]  decoder.weight    (PyTorch layout)
    returns:     [1, V]  logits
    """
    embed_dim, vocab_size = w_emb.shape
    # One-time layout plumbing outside the kernel: no in-kernel transposes.
    emb_table = w_emb.T          # [V, E]
    dec_t = w_dec.T              # [E, V]
    return pl.pallas_call(
        cbow_kernel,
        out_shape=jax.ShapeDtypeStruct((1, vocab_size), jnp.float32),
        in_specs=[
            pl.BlockSpec(memory_space=pltpu.MemorySpace.SMEM),   # indices (scalars)
            pl.BlockSpec(memory_space=pltpu.MemorySpace.VMEM),   # embedding table
            pl.BlockSpec(memory_space=pltpu.MemorySpace.VMEM),   # decoder^T
        ],
        out_specs=pl.BlockSpec(memory_space=pltpu.MemorySpace.VMEM),
    )(context_idx.astype(jnp.int32), emb_table, dec_t)


def cbow_forward_onehot(context_words, w_emb, w_dec):
    """Same interface as the PyTorch module: one-hot context [C, V] -> [1, V]."""
    idx = jnp.argmax(context_words, axis=1).astype(jnp.int32)
    return cbow_forward(idx, w_emb, w_dec)


if __name__ == "__main__":
    key = jax.random.PRNGKey(0)
    k_emb, k_dec, k_ctx = jax.random.split(key, 3)

    # Deterministic parameter init (nn.Linear-style uniform(-1/sqrt(in), 1/sqrt(in)))
    bound_emb = 1.0 / (VOCAB_SIZE ** 0.5)
    bound_dec = 1.0 / (EMBED_DIM ** 0.5)
    w_emb = jax.random.uniform(k_emb, (EMBED_DIM, VOCAB_SIZE),
                               minval=-bound_emb, maxval=bound_emb,
                               dtype=jnp.float32)
    w_dec = jax.random.uniform(k_dec, (VOCAB_SIZE, EMBED_DIM),
                               minval=-bound_dec, maxval=bound_dec,
                               dtype=jnp.float32)

    # Context: 4 word indices (the PyTorch model would see their one-hot rows).
    num_context = 4
    idx = jax.random.randint(k_ctx, (num_context,), 0, VOCAB_SIZE,
                             dtype=jnp.int32)
    context_words = jax.nn.one_hot(idx, VOCAB_SIZE, dtype=jnp.float32)

    # Index-based (fast) entry point.
    out = jax.block_until_ready(cbow_forward(idx, w_emb, w_dec))
    # One-hot entry point matching the original forward() signature.
    out_oh = jax.block_until_ready(cbow_forward_onehot(context_words, w_emb, w_dec))

    # Pure-JAX reference identical to the PyTorch forward.
    ref = jnp.mean(context_words @ w_emb.T, axis=0, keepdims=True) @ w_dec.T

    assert out.shape == (1, VOCAB_SIZE)
    assert jnp.allclose(out, ref, atol=1e-5), (out, ref)
    assert jnp.allclose(out_oh, ref, atol=1e-5), (out_oh, ref)

    print("KERNEL_OK")
</pallas_src>

<mosaic_0001>
module attributes {stable_mosaic.version = 11 : i64} {
  func.func @cbow_kernel(%arg0: memref<4xi32, #tpu.memory_space<smem>>, %arg1: memref<12x16xf32, #tpu.memory_space<vmem>>, %arg2: memref<16x12xf32, #tpu.memory_space<vmem>>, %arg3: memref<1x12xf32, #tpu.memory_space<vmem>>) attributes {dimension_semantics = [], scalar_prefetch = 0 : i64, scratch_operands = 0 : i64, tpu.core_type = #tpu.core_type<tc>} {
    %c0 = arith.constant 0 : index
    %0 = memref.load %arg0[%c0] : memref<4xi32, #tpu.memory_space<smem>>
    %1 = arith.index_cast %0 : i32 to index
    %c0_0 = arith.constant 0 : index
    %2 = vector.load %arg1[%1, %c0_0] : memref<12x16xf32, #tpu.memory_space<vmem>>, vector<1x16xf32>
    %c1 = arith.constant 1 : index
    %3 = memref.load %arg0[%c1] : memref<4xi32, #tpu.memory_space<smem>>
    %4 = arith.index_cast %3 : i32 to index
    %c0_1 = arith.constant 0 : index
    %5 = vector.load %arg1[%4, %c0_1] : memref<12x16xf32, #tpu.memory_space<vmem>>, vector<1x16xf32>
    %6 = arith.addf %2, %5 : vector<1x16xf32>
    %c2 = arith.constant 2 : index
    %7 = memref.load %arg0[%c2] : memref<4xi32, #tpu.memory_space<smem>>
    %8 = arith.index_cast %7 : i32 to index
    %c0_2 = arith.constant 0 : index
    %9 = vector.load %arg1[%8, %c0_2] : memref<12x16xf32, #tpu.memory_space<vmem>>, vector<1x16xf32>
    %10 = arith.addf %6, %9 : vector<1x16xf32>
    %c3 = arith.constant 3 : index
    %11 = memref.load %arg0[%c3] : memref<4xi32, #tpu.memory_space<smem>>
    %12 = arith.index_cast %11 : i32 to index
    %c0_3 = arith.constant 0 : index
    %13 = vector.load %arg1[%12, %c0_3] : memref<12x16xf32, #tpu.memory_space<vmem>>, vector<1x16xf32>
    %14 = arith.addf %10, %13 : vector<1x16xf32>
    %cst = arith.constant 2.500000e-01 : f32
    %15 = vector.broadcast %cst : f32 to vector<1x16xf32>
    %16 = arith.mulf %14, %15 : vector<1x16xf32>
    %c0_4 = arith.constant 0 : index
    %c0_5 = arith.constant 0 : index
    %17 = vector.load %arg2[%c0_4, %c0_5] : memref<16x12xf32, #tpu.memory_space<vmem>>, vector<16x12xf32>
    %cst_6 = arith.constant dense<0.000000e+00> : vector<1x12xf32>
    %18 = tpu.matmul %16, %17, %cst_6 {dimension_numbers = #tpu.dot_dimension_numbers<[1], [0], [0], [1], [0, 0, 1, 1], [], []>} : vector<1x16xf32>, vector<16x12xf32>, vector<1x12xf32> -> vector<1x12xf32>
    %c0_7 = arith.constant 0 : index
    %c0_8 = arith.constant 0 : index
    %19 = vector.load %arg3[%c0_7, %c0_8] : memref<1x12xf32, #tpu.memory_space<vmem>>, vector<1x12xf32>
    tpu.vector_store %arg3[%c0_7, %c0_8], %18 {strides = array<i32>} : memref<1x12xf32, #tpu.memory_space<vmem>>, vector<1x12xf32>,
    return
  }
}

</mosaic_0001>

<llo_original>
// kernel: tpu_custom_call.1
$region0: #{tpu_custom_call.1}
  #allocation0 [shape = 'u32[]', space=smem, size = 0x4, offset = 0x4, fixed_abs, tag = 'smem constant byte address 0x4 - core index']
  #allocation1 [shape = 'u32[72,128]{1,0:T(1,128)}', space=vmem, size = 0x9000, scoped, tag = 'internal scratch']
  %s0 = inlined_call_operand.hbm [shape: s32[4], index: 0, kind: input, shape index: {}]
  %s1 = inlined_call_operand.hbm [shape: f32[12,16], index: 1, kind: input, shape index: {}]
  %s2 = inlined_call_operand.hbm [shape: f32[16,12], index: 2, kind: input, shape index: {}]
  %s3 = inlined_call_operand.hbm [shape: f32[1,12], index: 3, kind: output, shape index: {}]
  %s4 = sld [smem:[#allocation0]]
  $region34: #{tpu_custom_call.1} parent=0
    _
  %s6 = ssub.s32 1, %s4
  %s7 = scalar_select 0, %s6, %s4
  $region1: #{tpu_custom_call.1} parent=0
    #allocation2 [shape = 'u8[512]{0}', space=smem, size = 0x200, scoped, tag = 'input window, operand 0, single buffered']
    #allocation3 [shape = 's32[1]{0}', space=sflag, size = 0x4, scoped, tag = 'scoped memory for tpu_custom_call.1']
    #allocation4 [shape = 's32[1]{0}', space=sflag, size = 0x4, scoped, tag = 'scoped memory for tpu_custom_call.1']
    #allocation5 [shape = 's32[1]{0}', space=sflag, size = 0x4, scoped, tag = 'scoped memory for tpu_custom_call.1']
    #allocation6 [shape = 'u8[8192]{0}', space=vmem, size = 0x2000, scoped, tag = 'input window, operand 1, single buffered']
    #allocation7 [shape = 'u8[8192]{0}', space=vmem, size = 0x2000, scoped, tag = 'input window, operand 2, single buffered']
    #allocation8 [shape = 's32[1]{0}', space=sflag, size = 0x4, scoped, tag = 'scoped memory for tpu_custom_call.1']
    #allocation9 [shape = 'u8[512]{0}', space=vmem, size = 0x400, scoped, tag = 'output window, operand 0, single buffered']
    %8 = vsyncpa [#allocation5], 0
    %9 = vsyncpa [#allocation3], 0
    %10 = vsyncpa [#allocation8], 0
    %11 = vsyncpa [#allocation4], 0
    // Predicated region
    $region2: #{tpu_custom_call.1} parent=1 // pred_check
      _
    $region3: #{tpu_custom_call.1} parent=1 // pred_check_branch
      %13 = sbr.rel (0) target = $region5
    $region4: #{tpu_custom_call.1} parent=1 // pred_region
      %15 = vsyncadd [#allocation5], 0
      %s17 = sshll.u32 %s0, 4
      %s18 = int_to_ptr.hbm [resolvable:$true] %s17
      %20 = dma.hbm_to_smem %s18, 16, [#allocation2], [#allocation5]
    $region5: #{tpu_custom_call.1} parent=1 // pred_fallthru
      _
    // Predicated region
    $region6: #{tpu_custom_call.1} parent=1 // pred_check
      _
    $region7: #{tpu_custom_call.1} parent=1 // pred_check_branch
      %22 = sbr.rel (0) target = $region9
    $region8: #{tpu_custom_call.1} parent=1 // pred_region
      %24 = vsyncadd [#allocation3], 0
      %s25 = sshll.u32 %s1, 4
      %s26 = int_to_ptr.hbm [resolvable:$true] %s25
      %s27 = sshll.u32 [#allocation6], 4
      %s28 = int_to_ptr.vmem [resolvable:$true] %s27
      %33 = dma.hbm_to_vmem [thread:$0]  %s26, 256, %s28, [#allocation3], 128, 128, 8
    $region9: #{tpu_custom_call.1} parent=1 // pred_fallthru
      _
    // Predicated region
    $region10: #{tpu_custom_call.1} parent=1 // pred_check
      _
    $region11: #{tpu_custom_call.1} parent=1 // pred_check_branch
      %35 = sbr.rel (0) target = $region13
    $region12: #{tpu_custom_call.1} parent=1 // pred_region
      %37 = vsyncadd [#allocation8], 0
      %s38 = sshll.u32 %s2, 4
      %s39 = int_to_ptr.hbm [resolvable:$true] %s38
      %s40 = sshll.u32 [#allocation7], 4
      %s41 = int_to_ptr.vmem [resolvable:$true] %s40
      %46 = dma.hbm_to_vmem [thread:$0]  %s39, 256, %s41, [#allocation8], 128, 128, 8
    $region13: #{tpu_custom_call.1} parent=1 // pred_fallthru
      _
    // Predicated region
    $region14: #{tpu_custom_call.1} parent=1 // pred_check
      _
    $region15: #{tpu_custom_call.1} parent=1 // pred_check_branch
      %48 = sbr.rel (0) target = $region17
    $region16: #{tpu_custom_call.1} parent=1 // pred_region
      %50 = dma.done [#allocation5], 16
    $region17: #{tpu_custom_call.1} parent=1 // pred_fallthru
      _
    // Predicated region
    $region18: #{tpu_custom_call.1} parent=1 // pred_check
      _
    $region19: #{tpu_custom_call.1} parent=1 // pred_check_branch
      %52 = sbr.rel (0) target = $region21
    $region20: #{tpu_custom_call.1} parent=1 // pred_region
      %54 = dma.done [#allocation3], 256
    $region21: #{tpu_custom_call.1} parent=1 // pred_fallthru
      _
    // Predicated region
    $region22: #{tpu_custom_call.1} parent=1 // pred_check
      _
    $region23: #{tpu_custom_call.1} parent=1 // pred_check_branch
      %56 = sbr.rel (0) target = $region25
    $region24: #{tpu_custom_call.1} parent=1 // pred_region
      %58 = dma.done [#allocation8], 256
    $region25: #{tpu_custom_call.1} parent=1 // pred_fallthru
      _
    %59 = sfence
    %s60 = sld [smem:[#allocation2]]
    %s61 = scalar_lea.vmem [#allocation6], %s60
    %v62 = vld [vmem:[%s61] sm:$0x1]
    %s63 = sld [smem:[#allocation2 + $0x1]]
    %s64 = scalar_lea.vmem [#allocation6], %s63
    %v65 = vld [vmem:[%s64] sm:$0x1]
    %v66 = vadd.f32 %v62, %v65
    %s67 = sld [smem:[#allocation2 + $0x2]]
    %s68 = scalar_lea.vmem [#allocation6], %s67
    %v69 = vld [vmem:[%s68] sm:$0x1]
    %v70 = vadd.f32 %v66, %v69
    %s71 = sld [smem:[#allocation2 + $0x3]]
    %s72 = scalar_lea.vmem [#allocation6], %s71
    %v73 = vld [vmem:[%s72] sm:$0x1]
    %v74 = vadd.f32 %v70, %v73
    %v75 = vmul.f32 %v74, 0.25
    %v76 = vld [vmem:[#allocation7] sm:$0xff]
    %v77 = vld [vmem:[#allocation7 + $0x8] sm:$0xff]
    %vm78 = vcmask 130048
    %v80 = vsel %vm78, %v75, 0
    %82 = vmatpush.msra.mxu0 0.0
    %83 = vmatpush.msra.mxu0 0.0
    %84 = vmatpush.msra.mxu0 0.0
    %85 = vmatpush.msra.mxu0 0.0
    %86 = vmatpush.msra.mxu0 0.0
    %87 = vmatpush.msra.mxu0 0.0
    %88 = vmatpush.msra.mxu0 0.0
    %89 = vmatpush.msra.mxu0 0.0
    %90 = vmatpush.msra.mxu0 0.0
    %91 = vmatpush.msra.mxu0 0.0
    %92 = vmatpush.msra.mxu0 0.0
    %93 = vmatpush.msra.mxu0 0.0
    %94 = vmatpush.msra.mxu0 0.0
    %95 = vmatpush.msra.mxu0 0.0
    %96 = vmatpush.msra.mxu0 %v77
    %97 = vmatpush.msra.mxu0 %v76
    %98 = vmatmul.f32.gmra.mxu0 %v80
    %v99 = vpop.f32.mrf.mxu0
    %v100 = vadd.f32 0.0, %v99
    %101 = vdwg.mxu0
    %vm102 = vcmask 90112
    %103 = vst.msk [vmem:[#allocation9] sm:$0x1] %vm102, %v100
    // Predicated region
    $region26: #{tpu_custom_call.1} parent=1 // pred_check
      _
    $region27: #{tpu_custom_call.1} parent=1 // pred_check_branch
      %105 = sbr.rel (0) target = $region29
    $region28: #{tpu_custom_call.1} parent=1 // pred_region
      %107 = vsyncadd [#allocation4], 0
      %s109 = sshll.u32 [#allocation9], 4
      %s110 = int_to_ptr.vmem [resolvable:$true] %s109
      %s111 = sshll.u32 %s3, 4
      %s112 = int_to_ptr.hbm [resolvable:$true] %s111
      %114 = dma.vmem_to_hbm [thread:$0]  %s110, 16, %s112, [#allocation4]
    $region29: #{tpu_custom_call.1} parent=1 // pred_fallthru
      _
    // Predicated region
    $region30: #{tpu_custom_call.1} parent=1 // pred_check
      _
    $region31: #{tpu_custom_call.1} parent=1 // pred_check_branch
      %116 = sbr.rel (0) target = $region33
    $region32: #{tpu_custom_call.1} parent=1 // pred_region
      %118 = dma.done [#allocation4], 16
    $region33: #{tpu_custom_call.1} parent=1 // pred_fallthru
      _
    %119 = vsyncpa [#allocation3], 1
    %120 = vsyncpa [#allocation8], 1
    %121 = vsyncpa [#allocation4], 1
    %122 = vsyncpa [#allocation5], 1

</llo_original>
